<compile_context>
chip_gen: v6e
topology: v6e:2x2x1
jax: 0.10.0
libtpu: 0.0.40
codegen_flags: <defaults>
</compile_context>

<pallas_src>
import jax
import jax.numpy as jnp
from jax.experimental import pallas as pl
from jax.experimental.pallas import tpu as pltpu


def _round_up(a, b):
    return (a + b - 1) // b * b


def _itemsize(dtype):
    return jnp.zeros((), dtype).dtype.itemsize


def _physical_vmem_bytes():
    # v5e/v6e: 128 MiB, v7x: 64 MiB.  Fall back to the most conservative value.
    try:
        return int(pltpu.get_tpu_info().vmem_capacity_bytes)
    except Exception:
        return 64 << 20


def _gemm_bias_kernel(x_ref, w_ref, b_ref, o_ref, acc_ref):
    """One (tm, tn) output tile.  K is the innermost ("arbitrary") grid axis."""
    k = pl.program_id(2)

    @pl.when(k == 0)
    def _():
        acc_ref[...] = jnp.zeros_like(acc_ref)

    acc_ref[...] += jnp.dot(x_ref[...], w_ref[...],
                            preferred_element_type=jnp.float32)

    @pl.when(k == pl.num_programs(2) - 1)
    def _():
        # f32 bias add, single downcast to the (bf16) output dtype in-kernel.
        o_ref[...] = (acc_ref[...] + b_ref[...]).astype(o_ref.dtype)


def fused_linear_bias(x, w, bias=None, *, out_dtype=jnp.bfloat16,
                      operand_dtype=jnp.bfloat16, tm_max=512,
                      tn_force=None, tk_force=None):
    """Y = X @ W + b on the MXU.

    x: (M, K) channel-last activations, w: (K, N), bias: (N,) or None.
    Returns (M, N) in `out_dtype` (default bf16).  N is padded to a lane
    multiple internally and sliced back before returning.
    """
    M, K = x.shape
    K2, N = w.shape
    assert K == K2, (K, K2)

    opb = _itemsize(operand_dtype)
    outb = _itemsize(out_dtype)
    sub = 16 if opb == 2 else 8

    xm = x.astype(operand_dtype)
    wm = w.astype(operand_dtype)

    # ---- K (contraction) tiling: only as a guard for very large channel
    #      counts (keeps the working set bounded on v7x's 64 MiB VMEM). -------
    if tk_force is not None:
        tk = int(tk_force)
    elif K > 4096:
        tk = 2048
    else:
        tk = K
    if tk != K:
        assert tk % 128 == 0, tk
        K_pad = _round_up(K, tk)
        if K_pad != K:
            xm = jnp.pad(xm, ((0, 0), (0, K_pad - K)))
            wm = jnp.pad(wm, ((0, K_pad - K), (0, 0)))
    else:
        K_pad = K
    grid_k = K_pad // tk

    # ---- lane-dense N: keep this padding, it keeps output stores unmasked ---
    N_pad = _round_up(N, 128)
    if N_pad != N:
        wm = jnp.pad(wm, ((0, 0), (0, N_pad - N)))
    if bias is None:
        bm = jnp.zeros((1, N_pad), jnp.float32)
    else:
        bm = jnp.pad(bias.astype(jnp.float32), (0, N_pad - N)).reshape(1, N_pad)

    # ---- VMEM budget (generation-aware via get_tpu_info) ---------------------
    vmem_phys = _physical_vmem_bytes()
    vmem_budget = int(0.45 * vmem_phys)

    # ---- row tile: no M padding / no extra HBM pass; ragged last tile is
    #      handled by Pallas (masked output stores). --------------------------
    if tm_max == 512 and vmem_phys >= (96 << 20) and M >= 2048:
        tm_max = 1024                      # v5e/v6e: 128 MiB VMEM affords it
    tm = _round_up(min(tm_max, _round_up(M, sub)), sub)
    grid_m = pl.cdiv(M, tm)

    def footprint(tn_):
        return (2 * tm * tk * opb          # X tile (double-buffered)
                + 2 * tk * tn_ * opb       # W tile (double-buffered)
                + 2 * tn_ * 4              # bias tile
                + 2 * tm * tn_ * outb      # output tile
                + tm * tn_ * 4)            # f32 accumulator scratch

    # ---- N tile: weight residency first, else full-width (256) MXU tiles ----
    if tn_force is not None:
        tn = int(tn_force)
        assert tn % 128 == 0 and N_pad % tn == 0, (tn, N_pad)
    elif footprint(N_pad) <= vmem_budget:
        tn = N_pad                          # j axis collapses; weight DMA'd once
    elif N_pad % 256 == 0 and footprint(256) <= vmem_budget:
        tn = 256                            # full MXU column width on v6e/v7x
    else:
        tn = 128
    grid_n = N_pad // tn

    # ---- grid order: re-fetch the smaller operand when N must be tiled ------
    x_total = M * K_pad * opb
    w_total = K_pad * N_pad * opb
    n_outer = (grid_n > 1) and (w_total > x_total)
    if n_outer:
        grid = (grid_n, grid_m, grid_k)
        x_map = lambda j, i, k: (i, k)
        w_map = lambda j, i, k: (k, j)
        b_map = lambda j, i, k: (0, j)
        o_map = lambda j, i, k: (i, j)
    else:
        grid = (grid_m, grid_n, grid_k)
        x_map = lambda i, j, k: (i, k)
        w_map = lambda i, j, k: (k, j)
        b_map = lambda i, j, k: (0, j)
        o_map = lambda i, j, k: (i, j)

    # Deeper buffering for the weight stream when it is not fully resident
    # (hides DMA latency on low-bandwidth v5e).
    w_spec = pl.BlockSpec((tk, tn), w_map)
    if grid_n * grid_k > 1:
        try:
            w_spec = pl.BlockSpec((tk, tn), w_map, pipeline_mode=pl.Buffered(3))
        except (TypeError, AttributeError):
            pass                            # older jax: keep default 2-deep

    # ---- VMEM limit: true footprint + headroom, capped vs physical VMEM -----
    fp = footprint(tn)
    vmem_limit = int(min(max(fp + max(2 << 20, fp // 4), 4 << 20),
                         int(0.6 * vmem_phys)))

    # ---- cost estimate that counts the operand that is actually re-fetched --
    if n_outer:
        x_reads = x_total * grid_n
        w_reads = w_total * (grid_m if grid_k > 1 else 1)
    else:
        x_reads = x_total * (grid_n if grid_k > 1 else 1)
        w_reads = w_total * (grid_m if (grid_n > 1 or grid_k > 1) else 1)
    cost = pl.CostEstimate(
        flops=int(2 * grid_m * tm * K_pad * N_pad),
        transcendentals=0,
        bytes_accessed=int(x_reads + w_reads + bm.size * 4 + M * N_pad * outb))

    cp_kwargs = dict(dimension_semantics=("parallel", "parallel", "arbitrary"),
                     vmem_limit_bytes=vmem_limit)
    try:
        # Let XLA fuse the bf16 cast / im2col transpose into the X input DMA.
        compiler_params = pltpu.CompilerParams(
            allow_input_fusion=[True, False, False], **cp_kwargs)
    except TypeError:
        compiler_params = pltpu.CompilerParams(**cp_kwargs)

    out = pl.pallas_call(
        _gemm_bias_kernel,
        out_shape=jax.ShapeDtypeStruct((M, N_pad), out_dtype),
        grid_spec=pltpu.PrefetchScalarGridSpec(
            num_scalar_prefetch=0,
            grid=grid,
            in_specs=[
                pl.BlockSpec((tm, tk), x_map),   # activation rows
                w_spec,                          # weight (resident when it fits)
                pl.BlockSpec((1, tn), b_map),    # bias (free VPU filler)
            ],
            out_specs=pl.BlockSpec((tm, tn), o_map),
            scratch_shapes=[pltpu.VMEM((tm, tn), jnp.float32)],
        ),
        compiler_params=compiler_params,
        cost_estimate=cost,
    )(xm, wm, bm)

    return out[:, :N] if N_pad != N else out


# ---------------------------------------------------------------------------
# Adapters for the two conv flavours used around / inside the Encoder.
# ---------------------------------------------------------------------------
def patch_embed_nchw(x_nchw, weight, bias, patch_size, **kw):
    """Conv2d with kernel_size == stride == patch_size as a fused bias-GEMM."""
    B, C_in, H, W = x_nchw.shape
    C_out = weight.shape[0]
    p = patch_size
    nH, nW = H // p, W // p
    # bf16 im2col (half the transpose traffic); with allow_input_fusion the
    # cast/transpose can fuse into the kernel's input DMA.
    # TODO(synk): fully fuse the patch extraction into the kernel DMA (needs a
    # permuting BlockSpec / manual gather); for now it is done host-side.
    xp = x_nchw.astype(jnp.bfloat16).reshape(B, C_in, nH, p, nW, p)
    xp = jnp.transpose(xp, (0, 2, 4, 1, 3, 5)).reshape(B * nH * nW, C_in * p * p)
    wm = weight.reshape(C_out, C_in * p * p).T
    y = fused_linear_bias(xp, wm, bias, **kw)                 # (M, C_out) bf16
    # TODO(synk): keep channel-last when chaining into further Encoder kernels.
    return jnp.transpose(y.reshape(B, nH, nW, C_out), (0, 3, 1, 2))


def conv1x1_channels_last(x_mc, weight, bias=None, **kw):
    """1x1 conv (mhead*/project_out*/project_in/project_out) on a channel-last
    (M, C_in) activation matrix — zero layout glue."""
    C_out = weight.shape[0]
    return fused_linear_bias(x_mc, weight.reshape(C_out, -1).T, bias, **kw)


def conv1x1_nchw(x_nchw, weight, bias=None, **kw):
    """NCHW adapter around conv1x1_channels_last (reference-check only)."""
    B, C, H, W = x_nchw.shape
    x_mc = jnp.transpose(x_nchw.astype(jnp.bfloat16),
                         (0, 2, 3, 1)).reshape(B * H * W, C)
    y = conv1x1_channels_last(x_mc, weight, bias, **kw)
    return jnp.transpose(y.reshape(B, H, W, -1), (0, 3, 1, 2))


# ---------------------------------------------------------------------------
# Pure-JAX f32 references.
# ---------------------------------------------------------------------------
def _ref_patch_embed(x, w, b, p):
    y = jax.lax.conv_general_dilated(
        x, w, window_strides=(p, p), padding="VALID",
        dimension_numbers=("NCHW", "OIHW", "NCHW"))
    return y + b.reshape(1, -1, 1, 1)


def _ref_conv1x1(x, w, b=None):
    y = jnp.einsum("bchw,oc->bohw", x, w.reshape(w.shape[0], -1))
    if b is not None:
        y = y + b.reshape(1, -1, 1, 1)
    return y


if __name__ == "__main__":
    key = jax.random.PRNGKey(0)
    k1, k2, k3, k4, k5 = jax.random.split(key, 5)

    # --- 1) patch embedding: Conv2d(k=stride=4), img 16, in_channels 4 -------
    B, C, H, W, p = 2, 4, 16, 16, 4
    x = jax.random.normal(k1, (B, C, H, W), jnp.float32)
    fan_in = C * p * p
    bnd = 1.0 / (fan_in ** 0.5)
    w_pe = jax.random.uniform(k2, (C, C, p, p), jnp.float32, -bnd, bnd)
    b_pe = jax.random.uniform(k3, (C,), jnp.float32, -bnd, bnd)

    y1 = jax.block_until_ready(patch_embed_nchw(x, w_pe, b_pe, p))
    r1 = _ref_patch_embed(x, w_pe, b_pe, p)
    assert y1.shape == (B, C, H // p, W // p)
    # bf16 operands + bf16 output with f32 MXU accumulation vs f32 reference.
    assert jnp.allclose(y1.astype(jnp.float32), r1, atol=3e-2, rtol=3e-2)

    # --- 2) Encoder 1x1 projection (mhead-style), default tiling -------------
    B2, Cin, Cout, H2, W2 = 2, 256, 160, 6, 6
    x2 = jax.random.normal(k4, (B2, Cin, H2, W2), jnp.float32)
    bnd2 = 1.0 / (Cin ** 0.5)
    w_pr = jax.random.uniform(k5, (Cout, Cin, 1, 1), jnp.float32, -bnd2, bnd2)

    y2 = jax.block_until_ready(conv1x1_nchw(x2, w_pr, None))
    r2 = _ref_conv1x1(x2, w_pr, None)
    assert y2.shape == (B2, Cout, H2, W2)
    assert jnp.allclose(y2.astype(jnp.float32), r2, atol=3e-2, rtol=3e-2)

    # --- 3) same projection, forced multi-tile grid: exercises the ragged M
    #        tile, N tiling (grid order choice + buffered weight) and the
    #        K-accumulation path that were untested before ---------------------
    y3 = jax.block_until_ready(
        conv1x1_nchw(x2, w_pr, None, tm_max=64, tn_force=128, tk_force=128))
    assert jnp.allclose(y3.astype(jnp.float32), r2, atol=3e-2, rtol=3e-2)

    print("KERNEL_OK")
</pallas_src>

<mosaic_0001>
module attributes {stable_mosaic.version = 11 : i64} {
  func.func @_gemm_bias_kernel(%arg0: i32, %arg1: i32, %arg2: i32, %arg3: memref<32x64xbf16, #tpu.memory_space<vmem>>, %arg4: memref<64x128xbf16, #tpu.memory_space<vmem>>, %arg5: memref<1x128xf32, #tpu.memory_space<vmem>>, %arg6: memref<32x128xbf16, #tpu.memory_space<vmem>>, %arg7: memref<32x128xf32, #tpu.memory_space<vmem>>) attributes {dimension_semantics = [#tpu.dimension_semantics<parallel>, #tpu.dimension_semantics<parallel>, #tpu.dimension_semantics<arbitrary>], iteration_bounds = array<i64: 1, 1, 1>, scalar_prefetch = 0 : i64, scratch_operands = 1 : i64, tpu.core_type = #tpu.core_type<tc>, window_params = [{transform_indices = @transform_0, window_bounds = array<i64: 32, 64>}, {transform_indices = @transform_1, window_bounds = array<i64: 64, 128>}, {transform_indices = @transform_2, window_bounds = array<i64: 1, 128>}, {transform_indices = @transform_3, window_bounds = array<i64: 32, 128>}]} {
    %c0_i32 = arith.constant 0 : i32
    %0 = arith.cmpi eq, %arg2, %c0_i32 : i32
    %1 = arith.extui %0 : i1 to i32
    %c0_i32_0 = arith.constant 0 : i32
    %2 = arith.cmpi ne, %1, %c0_i32_0 : i32
    scf.if %2 {
      %cst_10 = arith.constant 0.000000e+00 : f32
      %12 = vector.broadcast %cst_10 : f32 to vector<32x128xf32>
      %c0_11 = arith.constant 0 : index
      %c0_12 = arith.constant 0 : index
      %13 = vector.load %arg7[%c0_11, %c0_12] : memref<32x128xf32, #tpu.memory_space<vmem>>, vector<32x128xf32>
      tpu.vector_store %arg7[%c0_11, %c0_12], %12 {strides = array<i32>} : memref<32x128xf32, #tpu.memory_space<vmem>>, vector<32x128xf32>,
    } else {
    }
    %c0 = arith.constant 0 : index
    %c0_1 = arith.constant 0 : index
    %3 = vector.load %arg7[%c0, %c0_1] : memref<32x128xf32, #tpu.memory_space<vmem>>, vector<32x128xf32>
    %c0_2 = arith.constant 0 : index
    %c0_3 = arith.constant 0 : index
    %4 = vector.load %arg3[%c0_2, %c0_3] : memref<32x64xbf16, #tpu.memory_space<vmem>>, vector<32x64xbf16>
    %c0_4 = arith.constant 0 : index
    %c0_5 = arith.constant 0 : index
    %5 = vector.load %arg4[%c0_4, %c0_5] : memref<64x128xbf16, #tpu.memory_space<vmem>>, vector<64x128xbf16>
    %cst = arith.constant dense<0.000000e+00> : vector<32x128xf32>
    %6 = tpu.matmul %4, %5, %cst {dimension_numbers = #tpu.dot_dimension_numbers<[1], [0], [0], [1], [0, 0, 1, 1], [], []>} : vector<32x64xbf16>, vector<64x128xbf16>, vector<32x128xf32> -> vector<32x128xf32>
    %7 = arith.addf %3, %6 : vector<32x128xf32>
    %c0_6 = arith.constant 0 : index
    %c0_7 = arith.constant 0 : index
    %8 = vector.load %arg7[%c0_6, %c0_7] : memref<32x128xf32, #tpu.memory_space<vmem>>, vector<32x128xf32>
    tpu.vector_store %arg7[%c0_6, %c0_7], %7 {strides = array<i32>} : memref<32x128xf32, #tpu.memory_space<vmem>>, vector<32x128xf32>,
    %c0_i32_8 = arith.constant 0 : i32
    %9 = arith.cmpi eq, %arg2, %c0_i32_8 : i32
    %10 = arith.extui %9 : i1 to i32
    %c0_i32_9 = arith.constant 0 : i32
    %11 = arith.cmpi ne, %10, %c0_i32_9 : i32
    scf.if %11 {
      %c0_10 = arith.constant 0 : index
      %c0_11 = arith.constant 0 : index
      %12 = vector.load %arg7[%c0_10, %c0_11] : memref<32x128xf32, #tpu.memory_space<vmem>>, vector<32x128xf32>
      %c0_12 = arith.constant 0 : index
      %c0_13 = arith.constant 0 : index
      %13 = vector.load %arg5[%c0_12, %c0_13] : memref<1x128xf32, #tpu.memory_space<vmem>>, vector<1x128xf32>
      %14 = vector.broadcast %13 : vector<1x128xf32> to vector<32x128xf32>
      %15 = arith.addf %12, %14 : vector<32x128xf32>
      %16 = arith.truncf %15 : vector<32x128xf32> to vector<32x128xbf16>
      %c0_14 = arith.constant 0 : index
      %c0_15 = arith.constant 0 : index
      %17 = vector.load %arg6[%c0_14, %c0_15] : memref<32x128xbf16, #tpu.memory_space<vmem>>, vector<32x128xbf16>
      tpu.vector_store %arg6[%c0_14, %c0_15], %16 {strides = array<i32>} : memref<32x128xbf16, #tpu.memory_space<vmem>>, vector<32x128xbf16>,
    } else {
    }
    return
  }
  func.func @transform_0(%arg0: i32, %arg1: i32, %arg2: i32) -> (i32, i32) {
    %c0_i32 = arith.constant 0 : i32
    return %arg0, %arg2 : i32, i32
  }
  func.func @transform_1(%arg0: i32, %arg1: i32, %arg2: i32) -> (i32, i32) {
    %c0_i32 = arith.constant 0 : i32
    return %arg2, %arg1 : i32, i32
  }
  func.func @transform_2(%arg0: i32, %arg1: i32, %arg2: i32) -> (i32, i32) {
    %c0_i32 = arith.constant 0 : i32
    %c0_i32_0 = arith.constant 0 : i32
    return %c0_i32, %arg1 : i32, i32
  }
  func.func @transform_3(%arg0: i32, %arg1: i32, %arg2: i32) -> (i32, i32) {
    %c0_i32 = arith.constant 0 : i32
    return %arg0, %arg1 : i32, i32
  }
}

</mosaic_0001>

<llo_original>
// kernel: tpu_custom_call.1
$region0: #{tpu_custom_call.1}
  #allocation0 [shape = 'u32[]', space=smem, size = 0x4, offset = 0x4, fixed_abs, tag = 'smem constant byte address 0x4 - core index']
  #allocation1 [shape = 'u32[144,128]{1,0:T(1,128)}', space=vmem, size = 0x12000, scoped, tag = 'internal scratch']
  #allocation2 [shape = 'f32[32,128]{1,0:T(8,128)}', space=vmem, size = 0x4000, scoped, tag = 'scratch operand']
  %s0 = inlined_call_operand.hbm [shape: bf16[32,64], index: 0, kind: input, shape index: {}]
  %s1 = inlined_call_operand.hbm [shape: bf16[64,128], index: 1, kind: input, shape index: {}]
  %s2 = inlined_call_operand.vmem [shape: f32[1,128], index: 2, kind: input, shape index: {}]
  %s3 = inlined_call_operand.hbm [shape: bf16[32,128], index: 3, kind: output, shape index: {}]
  %s4 = sld [smem:[#allocation0]]
  $region38: #{tpu_custom_call.1} parent=0
    _
  %s6 = ssub.s32 1, %s4
  %s7 = scalar_select 0, %s6, %s4
  $region1: #{tpu_custom_call.1} parent=0
    #allocation3 [shape = 'u8[8192]{0}', space=vmem, size = 0x2000, scoped, tag = 'input window, operand 0, single buffered']
    #allocation4 [shape = 's32[1]{0}', space=sflag, size = 0x4, scoped, tag = 'scoped memory for tpu_custom_call.1']
    #allocation5 [shape = 's32[1]{0}', space=sflag, size = 0x4, scoped, tag = 'scoped memory for tpu_custom_call.1']
    #allocation6 [shape = 'u8[16384]{0}', space=vmem, size = 0x4000, scoped, tag = 'input window, operand 1, single buffered']
    #allocation7 [shape = 's32[1]{0}', space=sflag, size = 0x4, scoped, tag = 'scoped memory for tpu_custom_call.1']
    #allocation8 [shape = 'u8[8192]{0}', space=vmem, size = 0x2000, scoped, tag = 'output window, operand 0, single buffered']
    %8 = vsyncpa [#allocation4], 0
    %9 = vsyncpa [#allocation7], 0
    %10 = vsyncpa [#allocation5], 0
    // Predicated region
    $region2: #{tpu_custom_call.1} parent=1 // pred_check
      _
    $region3: #{tpu_custom_call.1} parent=1 // pred_check_branch
      %12 = sbr.rel (0) target = $region5
    $region4: #{tpu_custom_call.1} parent=1 // pred_region
      %s14 = ssub.s32 256, 256
      %15 = vsyncadd [#allocation4], %s14
      %s16 = sshll.u32 [#allocation3], 4
      %s17 = int_to_ptr.vmem [resolvable:$true] %s16
      %22 = dma.hbm_to_vmem [thread:$0]  %s0, 256, %s17, [#allocation4], 64, 64, 4
    $region5: #{tpu_custom_call.1} parent=1 // pred_fallthru
      _
    // Predicated region
    $region6: #{tpu_custom_call.1} parent=1 // pred_check
      _
    $region7: #{tpu_custom_call.1} parent=1 // pred_check_branch
      %24 = sbr.rel (0) target = $region9
    $region8: #{tpu_custom_call.1} parent=1 // pred_region
      %s26 = ssub.s32 512, 512
      %27 = vsyncadd [#allocation7], %s26
      %s28 = sshll.u32 [#allocation6], 4
      %s29 = int_to_ptr.vmem [resolvable:$true] %s28
      %34 = dma.hbm_to_vmem [thread:$0]  %s1, 512, %s29, [#allocation7], 64, 64, 4
    $region9: #{tpu_custom_call.1} parent=1 // pred_fallthru
      _
    // Predicated region
    $region10: #{tpu_custom_call.1} parent=1 // pred_check
      _
    $region11: #{tpu_custom_call.1} parent=1 // pred_check_branch
      %36 = sbr.rel (0) target = $region13
    $region12: #{tpu_custom_call.1} parent=1 // pred_region
      _
    $region13: #{tpu_custom_call.1} parent=1 // pred_fallthru
      _
    // Predicated region
    $region14: #{tpu_custom_call.1} parent=1 // pred_check
      _
    $region15: #{tpu_custom_call.1} parent=1 // pred_check_branch
      %38 = sbr.rel (0) target = $region17
    $region16: #{tpu_custom_call.1} parent=1 // pred_region
      %39 = dma.done [#allocation4], 256
    $region17: #{tpu_custom_call.1} parent=1 // pred_fallthru
      _
    // Predicated region
    $region18: #{tpu_custom_call.1} parent=1 // pred_check
      _
    $region19: #{tpu_custom_call.1} parent=1 // pred_check_branch
      %41 = sbr.rel (0) target = $region21
    $region20: #{tpu_custom_call.1} parent=1 // pred_region
      %42 = dma.done [#allocation7], 512
    $region21: #{tpu_custom_call.1} parent=1 // pred_fallthru
      _
    %p44 = scmp.eq.s32.totalorder 0, 0
    // Predicated region
    $region22: #{tpu_custom_call.1} parent=1 // pred_check
      %p45 = pneg %p44
    $region23: #{tpu_custom_call.1} parent=1 // pred_check_branch
      %47 = sbr.rel (%p45) target = $region25
    $region24: #{tpu_custom_call.1} parent=1 // pred_region
      %48 = vst [vmem:[#allocation2] sm:$0xff] 0.0
      %49 = vst [vmem:[#allocation2 + $0x8] sm:$0xff] 0.0
      %50 = vst [vmem:[#allocation2 + $0x10] sm:$0xff] 0.0
      %51 = vst [vmem:[#allocation2 + $0x18] sm:$0xff] 0.0
    $region25: #{tpu_custom_call.1} parent=1 // pred_fallthru
      _
    %v52 = vld [vmem:[#allocation2] sm:$0xff]
    %v53 = vld [vmem:[#allocation2 + $0x8] sm:$0xff]
    %v54 = vld [vmem:[#allocation2 + $0x10] sm:$0xff]
    %v55 = vld [vmem:[#allocation2 + $0x18] sm:$0xff]
    %v56 = vld [vmem:[#allocation3] sm:$0xf]
    %v57 = vld [vmem:[#allocation3 + $0x4] sm:$0xf]
    %v58 = vld [vmem:[#allocation3 + $0x8] sm:$0xf]
    %v59 = vld [vmem:[#allocation3 + $0xc] sm:$0xf]
    %v60 = vld [vmem:[#allocation6] sm:$0xf]
    %v61 = vld [vmem:[#allocation6 + $0x4] sm:$0xf]
    %v62 = vld [vmem:[#allocation6 + $0x8] sm:$0xf]
    %v63 = vld [vmem:[#allocation6 + $0xc] sm:$0xf]
    %v64 = vld [vmem:[#allocation6 + $0x10] sm:$0xf]
    %v65 = vld [vmem:[#allocation6 + $0x14] sm:$0xf]
    %v66 = vld [vmem:[#allocation6 + $0x18] sm:$0xf]
    %v67 = vld [vmem:[#allocation6 + $0x1c] sm:$0xf]
    %v72 = vunpack.c.l.b16 %v56
    %v73 = vunpack.c.l.b16 %v57
    %v74 = vunpack.c.l.b16 %v58
    %v75 = vunpack.c.l.b16 %v59
    %v76 = vpack.c.b16 %v73, %v72
    %v77 = vpack.c.b16 %v75, %v74
    %v86 = vunpack.c.l.b16 %v60
    %v87 = vunpack.c.l.b16 %v61
    %v88 = vunpack.c.l.b16 %v62
    %v89 = vunpack.c.l.b16 %v63
    %v90 = vunpack.c.l.b16 %v64
    %v91 = vunpack.c.l.b16 %v65
    %v92 = vunpack.c.l.b16 %v66
    %v93 = vunpack.c.l.b16 %v67
    %v94 = vpack.c.b16 %v87, %v86
    %v95 = vpack.c.b16 %v89, %v88
    %v96 = vpack.c.b16 %v91, %v90
    %v97 = vpack.c.b16 %v93, %v92
    %vm102 = vcmask 523264
    %v104 = vsel %vm102, %v76, 0
    %v107 = vsel %vm102, %v77, 0
    %109 = vmatprep.subr.bf16.mxu0 0
    %110 = vmatpush1.bf16.msra.mxu0 0
    %111 = vmatprep.subr.bf16.mxu0 0
    %112 = vmatpush1.bf16.msra.mxu0 0
    %113 = vmatprep.subr.bf16.mxu0 0
    %114 = vmatpush1.bf16.msra.mxu0 0
    %115 = vmatprep.subr.bf16.mxu0 0
    %116 = vmatpush1.bf16.msra.mxu0 0
    %117 = vmatprep.subr.bf16.mxu0 0
    %118 = vmatpush1.bf16.msra.mxu0 %v97
    %119 = vmatprep.subr.bf16.mxu0 0
    %120 = vmatpush1.bf16.msra.mxu0 %v96
    %121 = vmatprep.subr.bf16.mxu0 0
    %122 = vmatpush1.bf16.msra.mxu0 %v95
    %123 = vmatprep.subr.bf16.mxu0 0
    %124 = vmatpush1.bf16.msra.mxu0 %v94
    %125 = vmatprep.subr.bf16.mxu0 0
    %126 = vmatpush2.bf16.msra.mxu0 0
    %127 = vmatprep.subr.bf16.mxu0 0
    %128 = vmatpush2.bf16.msra.mxu0 0
    %129 = vmatprep.subr.bf16.mxu0 0
    %130 = vmatpush2.bf16.msra.mxu0 0
    %131 = vmatprep.subr.bf16.mxu0 0
    %132 = vmatpush2.bf16.msra.mxu0 0
    %133 = vmatprep.subr.bf16.mxu0 0
    %134 = vmatpush2.bf16.msra.mxu0 0
    %135 = vmatprep.subr.bf16.mxu0 0
    %136 = vmatpush2.bf16.msra.mxu0 0
    %137 = vmatprep.subr.bf16.mxu0 0
    %138 = vmatpush2.bf16.msra.mxu0 0
    %139 = vmatprep.subr.bf16.mxu0 0
    %140 = vmatpush2.bf16.msra.mxu0 0
    %141 = vmatprep.mubr.bf16.mxu0 0
    %142 = vmatmul.mubr.bf16.gmra.mxu0 %v104
    %v143 = vpop.f32.mrf.mxu0
    %v144 = vadd.f32 0.0, %v143
    %v145 = vpop.f32.mrf.mxu0
    %v146 = vpop.f32.mrf.mxu0
    %v147 = vadd.f32 0.0, %v146
    %v148 = vpop.f32.mrf.mxu0
    %149 = vmatprep.mubr.bf16.mxu0 0
    %150 = vmatmul.mubr.bf16.gmra.mxu0 %v107
    %v151 = vpop.f32.mrf.mxu0
    %v152 = vadd.f32 0.0, %v151
    %v153 = vpop.f32.mrf.mxu0
    %v154 = vpop.f32.mrf.mxu0
    %v155 = vadd.f32 0.0, %v154
    %v156 = vpop.f32.mrf.mxu0
    %157 = vdwg.mxu0
    %v158 = vadd.f32 %v52, %v144
    %v159 = vadd.f32 %v53, %v147
    %v160 = vadd.f32 %v54, %v152
    %v161 = vadd.f32 %v55, %v155
    %162 = vst [vmem:[#allocation2] sm:$0xff] %v158
    %163 = vst [vmem:[#allocation2 + $0x8] sm:$0xff] %v159
    %164 = vst [vmem:[#allocation2 + $0x10] sm:$0xff] %v160
    %165 = vst [vmem:[#allocation2 + $0x18] sm:$0xff] %v161
    // Predicated region
    $region26: #{tpu_custom_call.1} parent=1 // pred_check
      %p166 = pneg %p44
    $region27: #{tpu_custom_call.1} parent=1 // pred_check_branch
      %168 = sbr.rel (%p166) target = $region29
    $region28: #{tpu_custom_call.1} parent=1 // pred_region
      %v169 = vld [vmem:[#allocation2] sm:$0xff]
      %v170 = vld [vmem:[#allocation2 + $0x8] sm:$0xff]
      %v171 = vld [vmem:[#allocation2 + $0x10] sm:$0xff]
      %v172 = vld [vmem:[#allocation2 + $0x18] sm:$0xff]
      %v173 = vld [vmem:[%s2] sm:$0x1]
      %v175 = vlaneseq
      %v176 = vshrl.u32 %v175, 7
      %v177 = vsub.s32 0, %v176
      %v178 = vrot.slane %v173, %v177
      %v180 = vadd.f32 %v169, %v178
      %v181 = vadd.f32 %v170, %v178
      %v182 = vadd.f32 %v171, %v178
      %v183 = vadd.f32 %v172, %v178
      %v184 = vpack.c.bf16 %v181, %v180
      %v185 = vpack.c.bf16 %v183, %v182
      %v188 = vunpack.c.l.b16 %v184
      %v189 = vunpack.c.h.b16 %v184
      %v190 = vunpack.c.l.b16 %v185
      %v191 = vunpack.c.h.b16 %v185
      %v192 = vpack.c.b16 %v188, %v188
      %v193 = vpack.c.b16 %v189, %v189
      %v194 = vpack.c.b16 %v190, %v190
      %v195 = vpack.c.b16 %v191, %v191
      %200 = vst [vmem:[#allocation8] sm:$0xf] %v192
      %201 = vst [vmem:[#allocation8 + $0x4] sm:$0xf] %v193
      %202 = vst [vmem:[#allocation8 + $0x8] sm:$0xf] %v194
      %203 = vst [vmem:[#allocation8 + $0xc] sm:$0xf] %v195
    $region29: #{tpu_custom_call.1} parent=1 // pred_fallthru
      _
    // Predicated region
    $region30: #{tpu_custom_call.1} parent=1 // pred_check
      _
    $region31: #{tpu_custom_call.1} parent=1 // pred_check_branch
      %205 = sbr.rel (0) target = $region33
    $region32: #{tpu_custom_call.1} parent=1 // pred_region
      %s207 = ssub.s32 256, 256
      %208 = vsyncadd [#allocation5], %s207
      %s209 = sshll.u32 [#allocation8], 4
      %s210 = int_to_ptr.vmem [resolvable:$true] %s209
      %215 = dma.vmem_to_hbm [thread:$0]  %s210, 256, %s3, [#allocation5], 64, 64, 4
    $region33: #{tpu_custom_call.1} parent=1 // pred_fallthru
      _
    // Predicated region
    $region34: #{tpu_custom_call.1} parent=1 // pred_check
      _
    $region35: #{tpu_custom_call.1} parent=1 // pred_check_branch
      %217 = sbr.rel (0) target = $region37
    $region36: #{tpu_custom_call.1} parent=1 // pred_region
      %218 = dma.done [#allocation5], 256
    $region37: #{tpu_custom_call.1} parent=1 // pred_fallthru
      _
    %219 = vsyncpa [#allocation4], 1
    %220 = vsyncpa [#allocation7], 1
    %221 = vsyncpa [#allocation5], 1

</llo_original>
